<compile_context>
chip_gen: v6e
topology: v6e:2x2x1
jax: 0.10.0
libtpu: 0.0.40
codegen_flags: <defaults>
</compile_context>

<pallas_src>
import jax
import jax.numpy as jnp
from jax.experimental import pallas as pl
from jax.experimental.pallas import tpu as pltpu


_LANE = 128
_SUBLANE = 8
_MIN_STREAM_ROWS = 128   # desired minimum streamed X-tile rows in the resident-weight path


def _round_up(x, m):
    return ((x + m - 1) // m) * m


def _vmem_budget():
    """Per-generation VMEM settings: (vmem_limit_bytes, tile-planning budget)."""
    try:
        cap = int(getattr(pltpu.get_tpu_info(), "vmem_capacity_bytes", 64 * 1024 * 1024))
    except Exception:                      # no info available -> be conservative (v7x-safe)
        cap = 64 * 1024 * 1024
    if cap >= 100 * 1024 * 1024:           # v5e / v6e: 128 MiB VMEM
        return 100 * 1024 * 1024, 90 * 1024 * 1024
    return 48 * 1024 * 1024, 40 * 1024 * 1024   # v7x: 64 MiB VMEM


def _plan_tiles(M_pad, K, N_pad, x_item, w_item, o_item,
                tile_m_override=None, tile_n_override=None):
    """Pick (tile_m, tile_n, grid_m, grid_n, vmem_limit) for the GEMM."""
    vmem_limit, budget = _vmem_budget()

    # ---- N tiling: keep the whole weight resident (single-buffered) when it fits,
    #      otherwise stream lane-dense weight column tiles on a 2-D grid. ----
    if tile_n_override is not None:
        tile_n = int(tile_n_override)
    else:
        resident_w = (K + 1) * N_pad * w_item                      # single-buffered W + bias
        min_stream = 2 * min(_MIN_STREAM_ROWS, M_pad) * (K * x_item + N_pad * o_item)
        if resident_w + min_stream <= budget:
            tile_n = N_pad
        else:
            tile_n = _LANE
            for cand in range(N_pad, _LANE - 1, -_LANE):
                if N_pad % cand:                                    # exact N blocks only
                    continue
                if 2 * (K + 1) * cand * w_item <= budget // 2:      # double-buffered W tile
                    tile_n = cand
                    break
    weight_resident = tile_n == N_pad

    # ---- M tiling under the remaining VMEM budget. ----
    w_bufs = 1 if weight_resident else 2      # Buffered(1) resident vs default double-buffer
    avail = max(budget - w_bufs * (K + 1) * tile_n * w_item, 0)
    per_row = 2 * (K * x_item + tile_n * o_item)   # double-buffered X row + output row
    tile_m_max = max(_SUBLANE, (avail // per_row) // _SUBLANE * _SUBLANE)
    tile_m_max = min(tile_m_max, 1024)

    if tile_m_override is not None:
        tile_m = int(tile_m_override)
    else:
        # Enough M tiles for DMA/compute overlap (and a v7x megacore split), but keep tiles
        # around >=256 rows so the ~0.35us per-grid-step overhead stays amortized.
        target_g = max(1, pl.cdiv(M_pad, 256))
        if M_pad >= 16 * _SUBLANE:
            target_g = max(target_g, 4 if M_pad >= 64 * _SUBLANE else 2)
            if target_g % 2:
                target_g += 1                 # even grid -> both TensorCores busy on v7x
        tile_m = min(tile_m_max, _round_up(pl.cdiv(M_pad, target_g), _SUBLANE))
        tile_m = max(_SUBLANE, min(tile_m, M_pad))

    grid_m = pl.cdiv(M_pad, tile_m)
    grid_n = pl.cdiv(N_pad, tile_n)
    return tile_m, tile_n, grid_m, grid_n, vmem_limit


def _head_matmul_kernel(x_ref, w_ref, b_ref, o_ref):
    # x_ref: [tile_m, K], w_ref: [K, tile_n], b_ref: [1, tile_n], o_ref: [tile_m, tile_n]
    acc = jnp.dot(x_ref[...], w_ref[...], preferred_element_type=jnp.float32)
    o_ref[...] = (acc + b_ref[...].astype(jnp.float32)).astype(o_ref.dtype)


def prepare_prediction_head_params(weight, bias, *, allow_bf16=False):
    """One-time parameter prep (hoisted out of the per-step forward).

    weight: [n_steps, head_dim] (nn.Linear.weight), bias: [n_steps].
    Returns wt: [head_dim, N_pad], b2: [1, N_pad] with N zero-padded to a lane multiple.
    """
    n_steps, _ = weight.shape
    n_pad = _round_up(n_steps, _LANE)          # lane-dense output stores (no vst.msk)
    wt = weight.T
    b2 = bias.reshape(1, n_steps)
    if n_pad != n_steps:
        wt = jnp.pad(wt, ((0, 0), (0, n_pad - n_steps)))
        b2 = jnp.pad(b2, ((0, 0), (0, n_pad - n_steps)))
    if allow_bf16:
        # Stream the weight as bf16 (MXU-native input, half the HBM bytes). Accumulation
        # and the bias add stay in f32 inside the kernel. Keep the param dtype otherwise.
        wt = wt.astype(jnp.bfloat16)
    return wt, b2


def prediction_head_apply(x, wt, b2, n_steps, *, out_dtype=None,
                          tile_m=None, tile_n=None):
    """x: [bs, nvars, d_model, n_patches]; wt/b2 from prepare_prediction_head_params.

    Returns [bs, n_steps, nvars] (PredictionHead.forward, individual=False, dropout=id).
    """
    bs, nvars, d_model, n_patches = x.shape
    K = d_model * n_patches
    assert wt.shape[0] == K, (wt.shape, K)
    N_pad = wt.shape[1]
    assert N_pad % _LANE == 0 and n_steps <= N_pad
    if out_dtype is None:
        out_dtype = jnp.promote_types(x.dtype, wt.dtype)

    M = bs * nvars
    M_pad = _round_up(M, _SUBLANE)             # pad rows only to a sublane multiple
    x2 = x.reshape(M, K)
    if M_pad != M:
        x2 = jnp.pad(x2, ((0, M_pad - M), (0, 0)))

    x_item = jnp.dtype(x2.dtype).itemsize
    w_item = jnp.dtype(wt.dtype).itemsize
    o_item = jnp.dtype(out_dtype).itemsize
    tm, tn, grid_m, grid_n, vmem_limit = _plan_tiles(
        M_pad, K, N_pad, x_item, w_item, o_item,
        tile_m_override=tile_m, tile_n_override=tile_n)

    w_reads = 1 if grid_n == 1 else grid_m     # N-tiled path re-streams W once per M tile
    cost = pl.CostEstimate(
        flops=2 * M * K * N_pad,
        transcendentals=0,
        bytes_accessed=(M_pad * K * x_item + w_reads * (K + 1) * N_pad * w_item
                        + M_pad * N_pad * o_item),
    )

    def _call(single_buffer_weight):
        if grid_n == 1:
            w_kw = {"pipeline_mode": pl.Buffered(1)} if single_buffer_weight else {}
            grid = (grid_m,)
            in_specs = [
                pl.BlockSpec((tm, K), lambda i: (i, 0)),               # streamed X tiles
                pl.BlockSpec((K, N_pad), lambda i: (0, 0), **w_kw),    # resident weight
                pl.BlockSpec((1, N_pad), lambda i: (0, 0), **w_kw),    # resident bias
            ]
            out_specs = pl.BlockSpec((tm, N_pad), lambda i: (i, 0))
            dims = ("parallel",)
        else:
            # Weight too large to keep resident: 2-D grid. N is the inner axis, so the X
            # block index is unchanged across it (no X re-DMA per column tile).
            grid = (grid_m, grid_n)
            in_specs = [
                pl.BlockSpec((tm, K), lambda i, j: (i, 0)),
                pl.BlockSpec((K, tn), lambda i, j: (0, j)),
                pl.BlockSpec((1, tn), lambda i, j: (0, j)),
            ]
            out_specs = pl.BlockSpec((tm, tn), lambda i, j: (i, j))
            dims = ("parallel", "parallel")
        return pl.pallas_call(
            _head_matmul_kernel,
            out_shape=jax.ShapeDtypeStruct((M_pad, N_pad), out_dtype),
            grid=grid,
            in_specs=in_specs,
            out_specs=out_specs,
            compiler_params=pltpu.CompilerParams(
                dimension_semantics=dims,
                vmem_limit_bytes=vmem_limit,
            ),
            cost_estimate=cost,
        )(x2, wt, b2)

    if grid_n == 1:
        try:
            out = _call(True)     # single-buffered resident weight (halves its VMEM cost)
        except Exception:
            out = _call(False)    # fallback if this JAX build rejects pipeline_mode
    else:
        out = _call(False)

    out = out[:M, :n_steps].reshape(bs, nvars, n_steps)
    return jnp.transpose(out, (0, 2, 1))                               # [bs, n_steps, nvars]


def prediction_head_forward(x, weight, bias, *, allow_bf16=False, tile_m=None, tile_n=None):
    """Convenience wrapper: parameter prep + apply. For repeated forwards with static
    weights, call prepare_prediction_head_params() once and reuse its outputs."""
    n_steps = weight.shape[0]
    out_dtype = jnp.promote_types(x.dtype, weight.dtype)
    wt, b2 = prepare_prediction_head_params(weight, bias, allow_bf16=allow_bf16)
    xs = x.astype(jnp.bfloat16) if allow_bf16 else x
    return prediction_head_apply(xs, wt, b2, n_steps, out_dtype=out_dtype,
                                 tile_m=tile_m, tile_n=tile_n)


# TODO(synk): the `individual=True` path (one Linear per feature) is not implemented; the
# default PatchTST config uses the shared-Linear path reproduced here.


if __name__ == "__main__":
    key = jax.random.PRNGKey(0)

    def make_case(k, bs, nvars, d_model, n_patches, n_steps):
        head_dim = d_model * n_patches
        kx, kw, kb = jax.random.split(k, 3)
        x = jax.random.normal(kx, (bs, nvars, d_model, n_patches), dtype=jnp.float32)
        bound = 1.0 / jnp.sqrt(jnp.float32(head_dim))   # nn.Linear default init range
        w = jax.random.uniform(kw, (n_steps, head_dim), minval=-bound, maxval=bound,
                               dtype=jnp.float32)
        b = jax.random.uniform(kb, (n_steps,), minval=-bound, maxval=bound,
                               dtype=jnp.float32)
        return x, w, b

    def reference(x, w, b):
        bs, nvars, d_model, n_patches = x.shape
        z = x.reshape(bs, nvars, d_model * n_patches)
        out = jnp.einsum("bvk,nk->bvn", z, w) + b
        return jnp.transpose(out, (0, 2, 1))

    k1, k2 = jax.random.split(key)

    # 1) Small default case (resident-weight path, 1-D grid).
    x, w, b = make_case(k1, bs=2, nvars=4, d_model=32, n_patches=8, n_steps=16)
    out = jax.block_until_ready(prediction_head_forward(x, w, b))
    ref = reference(x, w, b)
    assert out.shape == (2, 16, 4)
    assert jnp.allclose(out, ref, atol=1e-5, rtol=1e-5)

    # 2) Force the 2-D (M, N)-tiled fallback path at small shapes (grid = (4, 2)).
    x2, w2, b2 = make_case(k2, bs=4, nvars=8, d_model=16, n_patches=8, n_steps=160)
    out2 = jax.block_until_ready(
        prediction_head_forward(x2, w2, b2, tile_m=8, tile_n=128))
    ref2 = reference(x2, w2, b2)
    assert out2.shape == (4, 160, 8)
    assert jnp.allclose(out2, ref2, atol=1e-5, rtol=1e-5)

    # 3) bf16-streamed variant (f32 accumulation), loose tolerance.
    out3 = jax.block_until_ready(prediction_head_forward(x, w, b, allow_bf16=True))
    assert jnp.allclose(out3, ref, atol=5e-2, rtol=5e-2)

    print("KERNEL_OK")
</pallas_src>

<mosaic_0001>
module attributes {stable_mosaic.version = 11 : i64} {
  func.func @_head_matmul_kernel(%arg0: i32, %arg1: memref<8x256xf32, #tpu.memory_space<vmem>>, %arg2: memref<256x128xf32, #tpu.memory_space<vmem>>, %arg3: memref<1x128xf32, #tpu.memory_space<vmem>>, %arg4: memref<8x128xf32, #tpu.memory_space<vmem>>) attributes {dimension_semantics = [#tpu.dimension_semantics<parallel>], iteration_bounds = array<i64: 1>, scalar_prefetch = 0 : i64, scratch_operands = 0 : i64, tpu.core_type = #tpu.core_type<tc>, window_params = [{transform_indices = @transform_0, window_bounds = array<i64: 8, 256>}, {pipeline_mode = #tpu.pipeline_mode<synchronous>, transform_indices = @transform_1, window_bounds = array<i64: 256, 128>}, {pipeline_mode = #tpu.pipeline_mode<synchronous>, transform_indices = @transform_2, window_bounds = array<i64: 1, 128>}, {transform_indices = @transform_3, window_bounds = array<i64: 8, 128>}]} {
    %c0 = arith.constant 0 : index
    %c0_0 = arith.constant 0 : index
    %0 = vector.load %arg1[%c0, %c0_0] : memref<8x256xf32, #tpu.memory_space<vmem>>, vector<8x256xf32>
    %c0_1 = arith.constant 0 : index
    %c0_2 = arith.constant 0 : index
    %1 = vector.load %arg2[%c0_1, %c0_2] : memref<256x128xf32, #tpu.memory_space<vmem>>, vector<256x128xf32>
    %cst = arith.constant dense<0.000000e+00> : vector<8x128xf32>
    %2 = tpu.matmul %0, %1, %cst {dimension_numbers = #tpu.dot_dimension_numbers<[1], [0], [0], [1], [0, 0, 1, 1], [], []>} : vector<8x256xf32>, vector<256x128xf32>, vector<8x128xf32> -> vector<8x128xf32>
    %c0_3 = arith.constant 0 : index
    %c0_4 = arith.constant 0 : index
    %3 = vector.load %arg3[%c0_3, %c0_4] : memref<1x128xf32, #tpu.memory_space<vmem>>, vector<1x128xf32>
    %4 = vector.broadcast %3 : vector<1x128xf32> to vector<8x128xf32>
    %5 = arith.addf %2, %4 : vector<8x128xf32>
    %c0_5 = arith.constant 0 : index
    %c0_6 = arith.constant 0 : index
    %6 = vector.load %arg4[%c0_5, %c0_6] : memref<8x128xf32, #tpu.memory_space<vmem>>, vector<8x128xf32>
    tpu.vector_store %arg4[%c0_5, %c0_6], %5 {strides = array<i32>} : memref<8x128xf32, #tpu.memory_space<vmem>>, vector<8x128xf32>,
    return
  }
  func.func @transform_0(%arg0: i32) -> (i32, i32) {
    %c0_i32 = arith.constant 0 : i32
    %c0_i32_0 = arith.constant 0 : i32
    return %arg0, %c0_i32 : i32, i32
  }
  func.func @transform_1(%arg0: i32) -> (i32, i32) {
    %c0_i32 = arith.constant 0 : i32
    %c0_i32_0 = arith.constant 0 : i32
    %c0_i32_1 = arith.constant 0 : i32
    return %c0_i32, %c0_i32_0 : i32, i32
  }
  func.func @transform_2(%arg0: i32) -> (i32, i32) {
    %c0_i32 = arith.constant 0 : i32
    %c0_i32_0 = arith.constant 0 : i32
    %c0_i32_1 = arith.constant 0 : i32
    return %c0_i32, %c0_i32_0 : i32, i32
  }
  func.func @transform_3(%arg0: i32) -> (i32, i32) {
    %c0_i32 = arith.constant 0 : i32
    %c0_i32_0 = arith.constant 0 : i32
    return %arg0, %c0_i32 : i32, i32
  }
}

module attributes {stable_mosaic.version = 11 : i64} {
  func.func @_head_matmul_kernel(%arg0: i32, %arg1: memref<8x256xf32, #tpu.memory_space<vmem>>, %arg2: memref<256x128xf32, #tpu.memory_space<vmem>>, %arg3: memref<1x128xf32, #tpu.memory_space<vmem>>, %arg4: memref<8x128xf32, #tpu.memory_space<vmem>>) attributes {dimension_semantics = [#tpu.dimension_semantics<parallel>], iteration_bounds = array<i64: 1>, scalar_prefetch = 0 : i64, scratch_operands = 0 : i64, tpu.core_type = #tpu.core_type<tc>, window_params = [{transform_indices = @transform_0, window_bounds = array<i64: 8, 256>}, {pipeline_mode = #tpu.pipeline_mode<synchronous>, transform_indices = @transform_1, window_bounds = array<i64: 256, 128>}, {pipeline_mode = #tpu.pipeline_mode<synchronous>, transform_indices = @transform_2, window_bounds = array<i64: 1, 128>}, {transform_indices = @transform_3, window_bounds = array<i64: 8, 128>}]} {
    %c0 = arith.constant 0 : index
    %c0_0 = arith.constant 0 : index
    %0 = vector.load %arg1[%c0, %c0_0] : memref<8x256xf32, #tpu.memory_space<vmem>>, vector<8x256xf32>
    %c0_1 = arith.constant 0 : index
    %c0_2 = arith.constant 0 : index
    %1 = vector.load %arg2[%c0_1, %c0_2] : memref<256x128xf32, #tpu.memory_space<vmem>>, vector<256x128xf32>
    %cst = arith.constant dense<0.000000e+00> : vector<8x128xf32>
    %2 = tpu.matmul %0, %1, %cst {dimension_numbers = #tpu.dot_dimension_numbers<[1], [0], [0], [1], [0, 0, 1, 1], [], []>} : vector<8x256xf32>, vector<256x128xf32>, vector<8x128xf32> -> vector<8x128xf32>
    %c0_3 = arith.constant 0 : index
    %c0_4 = arith.constant 0 : index
    %3 = vector.load %arg3[%c0_3, %c0_4] : memref<1x128xf32, #tpu.memory_space<vmem>>, vector<1x128xf32>
    %4 = vector.broadcast %3 : vector<1x128xf32> to vector<8x128xf32>
    %5 = arith.addf %2, %4 : vector<8x128xf32>
    %c0_5 = arith.constant 0 : index
    %c0_6 = arith.constant 0 : index
    %6 = vector.load %arg4[%c0_5, %c0_6] : memref<8x128xf32, #tpu.memory_space<vmem>>, vector<8x128xf32>
    tpu.vector_store %arg4[%c0_5, %c0_6], %5 {strides = array<i32>} : memref<8x128xf32, #tpu.memory_space<vmem>>, vector<8x128xf32>,
    return
  }
  func.func @transform_0(%arg0: i32) -> (i32, i32) {
    %c0_i32 = arith.constant 0 : i32
    %c0_i32_0 = arith.constant 0 : i32
    return %arg0, %c0_i32 : i32, i32
  }
  func.func @transform_1(%arg0: i32) -> (i32, i32) {
    %c0_i32 = arith.constant 0 : i32
    %c0_i32_0 = arith.constant 0 : i32
    %c0_i32_1 = arith.constant 0 : i32
    return %c0_i32, %c0_i32_0 : i32, i32
  }
  func.func @transform_2(%arg0: i32) -> (i32, i32) {
    %c0_i32 = arith.constant 0 : i32
    %c0_i32_0 = arith.constant 0 : i32
    %c0_i32_1 = arith.constant 0 : i32
    return %c0_i32, %c0_i32_0 : i32, i32
  }
  func.func @transform_3(%arg0: i32) -> (i32, i32) {
    %c0_i32 = arith.constant 0 : i32
    %c0_i32_0 = arith.constant 0 : i32
    return %arg0, %c0_i32 : i32, i32
  }
}

</mosaic_0001>

<llo_original>
// kernel: tpu_custom_call.1
$region0: #{tpu_custom_call.1}
  #allocation0 [shape = 'u32[]', space=smem, size = 0x4, offset = 0x4, fixed_abs, tag = 'smem constant byte address 0x4 - core index']
  #allocation1 [shape = 'u32[144,128]{1,0:T(1,128)}', space=vmem, size = 0x12000, scoped, tag = 'internal scratch']
  %s0 = inlined_call_operand.hbm [shape: f32[8,256], index: 0, kind: input, shape index: {}]
  %s1 = inlined_call_operand.hbm [shape: f32[256,128], index: 1, kind: input, shape index: {}]
  %s2 = inlined_call_operand.vmem [shape: f32[1,128], index: 2, kind: input, shape index: {}]
  %s3 = inlined_call_operand.hbm [shape: f32[8,128], index: 3, kind: output, shape index: {}]
  %s4 = sld [smem:[#allocation0]]
  $region30: #{tpu_custom_call.1} parent=0
    _
  %s6 = ssub.s32 1, %s4
  %s7 = scalar_select 0, %s6, %s4
  $region1: #{tpu_custom_call.1} parent=0
    #allocation2 [shape = 'u8[8192]{0}', space=vmem, size = 0x2000, scoped, tag = 'input window, operand 0, single buffered']
    #allocation3 [shape = 's32[1]{0}', space=sflag, size = 0x4, scoped, tag = 'scoped memory for tpu_custom_call.1']
    #allocation4 [shape = 's32[1]{0}', space=sflag, size = 0x4, scoped, tag = 'scoped memory for tpu_custom_call.1']
    #allocation5 [shape = 'u8[131072]{0}', space=vmem, size = 0x20000, scoped, tag = 'input window, operand 1, single buffered']
    #allocation6 [shape = 's32[1]{0}', space=sflag, size = 0x4, scoped, tag = 'scoped memory for tpu_custom_call.1']
    #allocation7 [shape = 'u8[4096]{0}', space=vmem, size = 0x1000, scoped, tag = 'output window, operand 0, single buffered']
    %8 = vsyncpa [#allocation3], 0
    %9 = vsyncpa [#allocation6], 0
    %10 = vsyncpa [#allocation4], 0
    // Predicated region
    $region2: #{tpu_custom_call.1} parent=1 // pred_check
      _
    $region3: #{tpu_custom_call.1} parent=1 // pred_check_branch
      %12 = sbr.rel (0) target = $region5
    $region4: #{tpu_custom_call.1} parent=1 // pred_region
      %s14 = ssub.s32 256, 256
      %15 = vsyncadd [#allocation3], %s14
      %s17 = sshll.u32 [#allocation2], 4
      %s18 = int_to_ptr.vmem [resolvable:$true] %s17
      %20 = dma.hbm_to_vmem [thread:$0]  %s0, 256, %s18, [#allocation3]
    $region5: #{tpu_custom_call.1} parent=1 // pred_fallthru
      _
    // Predicated region
    $region6: #{tpu_custom_call.1} parent=1 // pred_check
      _
    $region7: #{tpu_custom_call.1} parent=1 // pred_check_branch
      %22 = sbr.rel (0) target = $region9
    $region8: #{tpu_custom_call.1} parent=1 // pred_region
      %s24 = ssub.s32 4096, 4096
      %25 = vsyncadd [#allocation6], %s24
      %s26 = sshll.u32 [#allocation5], 4
      %s27 = int_to_ptr.vmem [resolvable:$true] %s26
      %32 = dma.hbm_to_vmem [thread:$0]  %s1, 4096, %s27, [#allocation6], 128, 128, 8
    $region9: #{tpu_custom_call.1} parent=1 // pred_fallthru
      _
    // Predicated region
    $region10: #{tpu_custom_call.1} parent=1 // pred_check
      _
    $region11: #{tpu_custom_call.1} parent=1 // pred_check_branch
      %34 = sbr.rel (0) target = $region13
    $region12: #{tpu_custom_call.1} parent=1 // pred_region
      _
    $region13: #{tpu_custom_call.1} parent=1 // pred_fallthru
      _
    // Predicated region
    $region14: #{tpu_custom_call.1} parent=1 // pred_check
      _
    $region15: #{tpu_custom_call.1} parent=1 // pred_check_branch
      %36 = sbr.rel (0) target = $region17
    $region16: #{tpu_custom_call.1} parent=1 // pred_region
      %37 = dma.done [#allocation3], 256
    $region17: #{tpu_custom_call.1} parent=1 // pred_fallthru
      _
    // Predicated region
    $region18: #{tpu_custom_call.1} parent=1 // pred_check
      _
    $region19: #{tpu_custom_call.1} parent=1 // pred_check_branch
      %39 = sbr.rel (0) target = $region21
    $region20: #{tpu_custom_call.1} parent=1 // pred_region
      %40 = dma.done [#allocation6], 4096
    $region21: #{tpu_custom_call.1} parent=1 // pred_fallthru
      _
    %v41 = vld [vmem:[#allocation2] sm:$0xff]
    %v42 = vld [vmem:[#allocation2 + $0x8] sm:$0xff]
    %v43 = vld [vmem:[#allocation5] sm:$0xff]
    %v44 = vld [vmem:[#allocation5 + $0x8] sm:$0xff]
    %v45 = vld [vmem:[#allocation5 + $0x10] sm:$0xff]
    %v46 = vld [vmem:[#allocation5 + $0x18] sm:$0xff]
    %v47 = vld [vmem:[#allocation5 + $0x20] sm:$0xff]
    %v48 = vld [vmem:[#allocation5 + $0x28] sm:$0xff]
    %v49 = vld [vmem:[#allocation5 + $0x30] sm:$0xff]
    %v50 = vld [vmem:[#allocation5 + $0x38] sm:$0xff]
    %v51 = vld [vmem:[#allocation5 + $0x40] sm:$0xff]
    %v52 = vld [vmem:[#allocation5 + $0x48] sm:$0xff]
    %v53 = vld [vmem:[#allocation5 + $0x50] sm:$0xff]
    %v54 = vld [vmem:[#allocation5 + $0x58] sm:$0xff]
    %v55 = vld [vmem:[#allocation5 + $0x60] sm:$0xff]
    %v56 = vld [vmem:[#allocation5 + $0x68] sm:$0xff]
    %v57 = vld [vmem:[#allocation5 + $0x70] sm:$0xff]
    %v58 = vld [vmem:[#allocation5 + $0x78] sm:$0xff]
    %v59 = vld [vmem:[#allocation5 + $0x80] sm:$0xff]
    %v60 = vld [vmem:[#allocation5 + $0x88] sm:$0xff]
    %v61 = vld [vmem:[#allocation5 + $0x90] sm:$0xff]
    %v62 = vld [vmem:[#allocation5 + $0x98] sm:$0xff]
    %v63 = vld [vmem:[#allocation5 + $0xa0] sm:$0xff]
    %v64 = vld [vmem:[#allocation5 + $0xa8] sm:$0xff]
    %v65 = vld [vmem:[#allocation5 + $0xb0] sm:$0xff]
    %v66 = vld [vmem:[#allocation5 + $0xb8] sm:$0xff]
    %v67 = vld [vmem:[#allocation5 + $0xc0] sm:$0xff]
    %v68 = vld [vmem:[#allocation5 + $0xc8] sm:$0xff]
    %v69 = vld [vmem:[#allocation5 + $0xd0] sm:$0xff]
    %v70 = vld [vmem:[#allocation5 + $0xd8] sm:$0xff]
    %v71 = vld [vmem:[#allocation5 + $0xe0] sm:$0xff]
    %v72 = vld [vmem:[#allocation5 + $0xe8] sm:$0xff]
    %v73 = vld [vmem:[#allocation5 + $0xf0] sm:$0xff]
    %v74 = vld [vmem:[#allocation5 + $0xf8] sm:$0xff]
    %v75 = vld [vmem:[%s2] sm:$0x1]
    %v77 = vlaneseq
    %v78 = vshrl.u32 %v77, 7
    %v79 = vsub.s32 0, %v78
    %v80 = vrot.slane %v75, %v79
    %82 = vmatprep.subr.mxu0 0.0
    %83 = vmatpush1.msra.mxu0 %v58
    %84 = vmatprep.subr.mxu0 0.0
    %85 = vmatpush1.msra.mxu0 %v57
    %86 = vmatprep.subr.mxu0 0.0
    %87 = vmatpush1.msra.mxu0 %v56
    %88 = vmatprep.subr.mxu0 0.0
    %89 = vmatpush1.msra.mxu0 %v55
    %90 = vmatprep.subr.mxu0 0.0
    %91 = vmatpush1.msra.mxu0 %v54
    %92 = vmatprep.subr.mxu0 0.0
    %93 = vmatpush1.msra.mxu0 %v53
    %94 = vmatprep.subr.mxu0 0.0
    %95 = vmatpush1.msra.mxu0 %v52
    %96 = vmatprep.subr.mxu0 0.0
    %97 = vmatpush1.msra.mxu0 %v51
    %98 = vmatprep.subr.mxu0 0.0
    %99 = vmatpush1.msra.mxu0 %v50
    %100 = vmatprep.subr.mxu0 0.0
    %101 = vmatpush1.msra.mxu0 %v49
    %102 = vmatprep.subr.mxu0 0.0
    %103 = vmatpush1.msra.mxu0 %v48
    %104 = vmatprep.subr.mxu0 0.0
    %105 = vmatpush1.msra.mxu0 %v47
    %106 = vmatprep.subr.mxu0 0.0
    %107 = vmatpush1.msra.mxu0 %v46
    %108 = vmatprep.subr.mxu0 0.0
    %109 = vmatpush1.msra.mxu0 %v45
    %110 = vmatprep.subr.mxu0 0.0
    %111 = vmatpush1.msra.mxu0 %v44
    %112 = vmatprep.subr.mxu0 0.0
    %113 = vmatpush1.msra.mxu0 %v43
    %114 = vmatprep.subr.mxu0 0.0
    %115 = vmatpush2.msra.mxu0 %v74
    %116 = vmatprep.subr.mxu0 0.0
    %117 = vmatpush2.msra.mxu0 %v73
    %118 = vmatprep.subr.mxu0 0.0
    %119 = vmatpush2.msra.mxu0 %v72
    %120 = vmatprep.subr.mxu0 0.0
    %121 = vmatpush2.msra.mxu0 %v71
    %122 = vmatprep.subr.mxu0 0.0
    %123 = vmatpush2.msra.mxu0 %v70
    %124 = vmatprep.subr.mxu0 0.0
    %125 = vmatpush2.msra.mxu0 %v69
    %126 = vmatprep.subr.mxu0 0.0
    %127 = vmatpush2.msra.mxu0 %v68
    %128 = vmatprep.subr.mxu0 0.0
    %129 = vmatpush2.msra.mxu0 %v67
    %130 = vmatprep.subr.mxu0 0.0
    %131 = vmatpush2.msra.mxu0 %v66
    %132 = vmatprep.subr.mxu0 0.0
    %133 = vmatpush2.msra.mxu0 %v65
    %134 = vmatprep.subr.mxu0 0.0
    %135 = vmatpush2.msra.mxu0 %v64
    %136 = vmatprep.subr.mxu0 0.0
    %137 = vmatpush2.msra.mxu0 %v63
    %138 = vmatprep.subr.mxu0 0.0
    %139 = vmatpush2.msra.mxu0 %v62
    %140 = vmatprep.subr.mxu0 0.0
    %141 = vmatpush2.msra.mxu0 %v61
    %142 = vmatprep.subr.mxu0 0.0
    %143 = vmatpush2.msra.mxu0 %v60
    %144 = vmatprep.subr.mxu0 0.0
    %145 = vmatpush2.msra.mxu0 %v59
    %146 = vmatprep.mubr.f32.mxu0 %v42
    %147 = vmatmul.mubr.f32.gmra.mxu0 %v41
    %v148 = vpop.f32.mrf.mxu0
    %v149 = vadd.f32 %v80, %v148
    %v150 = vpop.f32.mrf.mxu0
    %151 = vdwg.mxu0
    %152 = vst [vmem:[#allocation7] sm:$0xff] %v149
    // Predicated region
    $region22: #{tpu_custom_call.1} parent=1 // pred_check
      _
    $region23: #{tpu_custom_call.1} parent=1 // pred_check_branch
      %154 = sbr.rel (0) target = $region25
    $region24: #{tpu_custom_call.1} parent=1 // pred_region
      %s156 = ssub.s32 128, 128
      %157 = vsyncadd [#allocation4], %s156
      %s159 = sshll.u32 [#allocation7], 4
      %s160 = int_to_ptr.vmem [resolvable:$true] %s159
      %162 = dma.vmem_to_hbm [thread:$0]  %s160, 128, %s3, [#allocation4]
    $region25: #{tpu_custom_call.1} parent=1 // pred_fallthru
      _
    // Predicated region
    $region26: #{tpu_custom_call.1} parent=1 // pred_check
      _
    $region27: #{tpu_custom_call.1} parent=1 // pred_check_branch
      %164 = sbr.rel (0) target = $region29
    $region28: #{tpu_custom_call.1} parent=1 // pred_region
      %165 = dma.done [#allocation4], 128
    $region29: #{tpu_custom_call.1} parent=1 // pred_fallthru
      _
    %166 = vsyncpa [#allocation3], 1
    %167 = vsyncpa [#allocation6], 1
    %168 = vsyncpa [#allocation4], 1

// kernel: tpu_custom_call.1
$region0: #{tpu_custom_call.1}
  #allocation0 [shape = 'u32[]', space=smem, size = 0x4, offset = 0x4, fixed_abs, tag = 'smem constant byte address 0x4 - core index']
  #allocation1 [shape = 'u32[144,128]{1,0:T(1,128)}', space=vmem, size = 0x12000, scoped, tag = 'internal scratch']
  %s0 = inlined_call_operand.hbm [shape: f32[8,256], index: 0, kind: input, shape index: {}]
  %s1 = inlined_call_operand.hbm [shape: f32[256,128], index: 1, kind: input, shape index: {}]
  %s2 = inlined_call_operand.vmem [shape: f32[1,128], index: 2, kind: input, shape index: {}]
  %s3 = inlined_call_operand.hbm [shape: f32[8,128], index: 3, kind: output, shape index: {}]
  %s4 = sld [smem:[#allocation0]]
  $region30: #{tpu_custom_call.1} parent=0
    _
  %s6 = ssub.s32 1, %s4
  %s7 = scalar_select 0, %s6, %s4
  $region1: #{tpu_custom_call.1} parent=0
    #allocation2 [shape = 'u8[8192]{0}', space=vmem, size = 0x2000, scoped, tag = 'input window, operand 0, single buffered']
    #allocation3 [shape = 's32[1]{0}', space=sflag, size = 0x4, scoped, tag = 'scoped memory for tpu_custom_call.1']
    #allocation4 [shape = 's32[1]{0}', space=sflag, size = 0x4, scoped, tag = 'scoped memory for tpu_custom_call.1']
    #allocation5 [shape = 'u8[131072]{0}', space=vmem, size = 0x20000, scoped, tag = 'input window, operand 1, single buffered']
    #allocation6 [shape = 's32[1]{0}', space=sflag, size = 0x4, scoped, tag = 'scoped memory for tpu_custom_call.1']
    #allocation7 [shape = 'u8[4096]{0}', space=vmem, size = 0x1000, scoped, tag = 'output window, operand 0, single buffered']
    %8 = vsyncpa [#allocation3], 0
    %9 = vsyncpa [#allocation6], 0
    %10 = vsyncpa [#allocation4], 0
    // Predicated region
    $region2: #{tpu_custom_call.1} parent=1 // pred_check
      _
    $region3: #{tpu_custom_call.1} parent=1 // pred_check_branch
      %12 = sbr.rel (0) target = $region5
    $region4: #{tpu_custom_call.1} parent=1 // pred_region
      %s14 = ssub.s32 256, 256
      %15 = vsyncadd [#allocation3], %s14
      %s17 = sshll.u32 [#allocation2], 4
      %s18 = int_to_ptr.vmem [resolvable:$true] %s17
      %20 = dma.hbm_to_vmem [thread:$0]  %s0, 256, %s18, [#allocation3]
    $region5: #{tpu_custom_call.1} parent=1 // pred_fallthru
      _
    // Predicated region
    $region6: #{tpu_custom_call.1} parent=1 // pred_check
      _
    $region7: #{tpu_custom_call.1} parent=1 // pred_check_branch
      %22 = sbr.rel (0) target = $region9
    $region8: #{tpu_custom_call.1} parent=1 // pred_region
      %s24 = ssub.s32 4096, 4096
      %25 = vsyncadd [#allocation6], %s24
      %s26 = sshll.u32 [#allocation5], 4
      %s27 = int_to_ptr.vmem [resolvable:$true] %s26
      %32 = dma.hbm_to_vmem [thread:$0]  %s1, 4096, %s27, [#allocation6], 128, 128, 8
    $region9: #{tpu_custom_call.1} parent=1 // pred_fallthru
      _
    // Predicated region
    $region10: #{tpu_custom_call.1} parent=1 // pred_check
      _
    $region11: #{tpu_custom_call.1} parent=1 // pred_check_branch
      %34 = sbr.rel (0) target = $region13
    $region12: #{tpu_custom_call.1} parent=1 // pred_region
      _
    $region13: #{tpu_custom_call.1} parent=1 // pred_fallthru
      _
    // Predicated region
    $region14: #{tpu_custom_call.1} parent=1 // pred_check
      _
    $region15: #{tpu_custom_call.1} parent=1 // pred_check_branch
      %36 = sbr.rel (0) target = $region17
    $region16: #{tpu_custom_call.1} parent=1 // pred_region
      %37 = dma.done [#allocation3], 256
    $region17: #{tpu_custom_call.1} parent=1 // pred_fallthru
      _
    // Predicated region
    $region18: #{tpu_custom_call.1} parent=1 // pred_check
      _
    $region19: #{tpu_custom_call.1} parent=1 // pred_check_branch
      %39 = sbr.rel (0) target = $region21
    $region20: #{tpu_custom_call.1} parent=1 // pred_region
      %40 = dma.done [#allocation6], 4096
    $region21: #{tpu_custom_call.1} parent=1 // pred_fallthru
      _
    %v41 = vld [vmem:[#allocation2] sm:$0xff]
    %v42 = vld [vmem:[#allocation2 + $0x8] sm:$0xff]
    %v43 = vld [vmem:[#allocation5] sm:$0xff]
    %v44 = vld [vmem:[#allocation5 + $0x8] sm:$0xff]
    %v45 = vld [vmem:[#allocation5 + $0x10] sm:$0xff]
    %v46 = vld [vmem:[#allocation5 + $0x18] sm:$0xff]
    %v47 = vld [vmem:[#allocation5 + $0x20] sm:$0xff]
    %v48 = vld [vmem:[#allocation5 + $0x28] sm:$0xff]
    %v49 = vld [vmem:[#allocation5 + $0x30] sm:$0xff]
    %v50 = vld [vmem:[#allocation5 + $0x38] sm:$0xff]
    %v51 = vld [vmem:[#allocation5 + $0x40] sm:$0xff]
    %v52 = vld [vmem:[#allocation5 + $0x48] sm:$0xff]
    %v53 = vld [vmem:[#allocation5 + $0x50] sm:$0xff]
    %v54 = vld [vmem:[#allocation5 + $0x58] sm:$0xff]
    %v55 = vld [vmem:[#allocation5 + $0x60] sm:$0xff]
    %v56 = vld [vmem:[#allocation5 + $0x68] sm:$0xff]
    %v57 = vld [vmem:[#allocation5 + $0x70] sm:$0xff]
    %v58 = vld [vmem:[#allocation5 + $0x78] sm:$0xff]
    %v59 = vld [vmem:[#allocation5 + $0x80] sm:$0xff]
    %v60 = vld [vmem:[#allocation5 + $0x88] sm:$0xff]
    %v61 = vld [vmem:[#allocation5 + $0x90] sm:$0xff]
    %v62 = vld [vmem:[#allocation5 + $0x98] sm:$0xff]
    %v63 = vld [vmem:[#allocation5 + $0xa0] sm:$0xff]
    %v64 = vld [vmem:[#allocation5 + $0xa8] sm:$0xff]
    %v65 = vld [vmem:[#allocation5 + $0xb0] sm:$0xff]
    %v66 = vld [vmem:[#allocation5 + $0xb8] sm:$0xff]
    %v67 = vld [vmem:[#allocation5 + $0xc0] sm:$0xff]
    %v68 = vld [vmem:[#allocation5 + $0xc8] sm:$0xff]
    %v69 = vld [vmem:[#allocation5 + $0xd0] sm:$0xff]
    %v70 = vld [vmem:[#allocation5 + $0xd8] sm:$0xff]
    %v71 = vld [vmem:[#allocation5 + $0xe0] sm:$0xff]
    %v72 = vld [vmem:[#allocation5 + $0xe8] sm:$0xff]
    %v73 = vld [vmem:[#allocation5 + $0xf0] sm:$0xff]
    %v74 = vld [vmem:[#allocation5 + $0xf8] sm:$0xff]
    %v75 = vld [vmem:[%s2] sm:$0x1]
    %v77 = vlaneseq
    %v78 = vshrl.u32 %v77, 7
    %v79 = vsub.s32 0, %v78
    %v80 = vrot.slane %v75, %v79
    %82 = vmatprep.subr.mxu0 0.0
    %83 = vmatpush1.msra.mxu0 %v58
    %84 = vmatprep.subr.mxu0 0.0
    %85 = vmatpush1.msra.mxu0 %v57
    %86 = vmatprep.subr.mxu0 0.0
    %87 = vmatpush1.msra.mxu0 %v56
    %88 = vmatprep.subr.mxu0 0.0
    %89 = vmatpush1.msra.mxu0 %v55
    %90 = vmatprep.subr.mxu0 0.0
    %91 = vmatpush1.msra.mxu0 %v54
    %92 = vmatprep.subr.mxu0 0.0
    %93 = vmatpush1.msra.mxu0 %v53
    %94 = vmatprep.subr.mxu0 0.0
    %95 = vmatpush1.msra.mxu0 %v52
    %96 = vmatprep.subr.mxu0 0.0
    %97 = vmatpush1.msra.mxu0 %v51
    %98 = vmatprep.subr.mxu0 0.0
    %99 = vmatpush1.msra.mxu0 %v50
    %100 = vmatprep.subr.mxu0 0.0
    %101 = vmatpush1.msra.mxu0 %v49
    %102 = vmatprep.subr.mxu0 0.0
    %103 = vmatpush1.msra.mxu0 %v48
    %104 = vmatprep.subr.mxu0 0.0
    %105 = vmatpush1.msra.mxu0 %v47
    %106 = vmatprep.subr.mxu0 0.0
    %107 = vmatpush1.msra.mxu0 %v46
    %108 = vmatprep.subr.mxu0 0.0
    %109 = vmatpush1.msra.mxu0 %v45
    %110 = vmatprep.subr.mxu0 0.0
    %111 = vmatpush1.msra.mxu0 %v44
    %112 = vmatprep.subr.mxu0 0.0
    %113 = vmatpush1.msra.mxu0 %v43
    %114 = vmatprep.subr.mxu0 0.0
    %115 = vmatpush2.msra.mxu0 %v74
    %116 = vmatprep.subr.mxu0 0.0
    %117 = vmatpush2.msra.mxu0 %v73
    %118 = vmatprep.subr.mxu0 0.0
    %119 = vmatpush2.msra.mxu0 %v72
    %120 = vmatprep.subr.mxu0 0.0
    %121 = vmatpush2.msra.mxu0 %v71
    %122 = vmatprep.subr.mxu0 0.0
    %123 = vmatpush2.msra.mxu0 %v70
    %124 = vmatprep.subr.mxu0 0.0
    %125 = vmatpush2.msra.mxu0 %v69
    %126 = vmatprep.subr.mxu0 0.0
    %127 = vmatpush2.msra.mxu0 %v68
    %128 = vmatprep.subr.mxu0 0.0
    %129 = vmatpush2.msra.mxu0 %v67
    %130 = vmatprep.subr.mxu0 0.0
    %131 = vmatpush2.msra.mxu0 %v66
    %132 = vmatprep.subr.mxu0 0.0
    %133 = vmatpush2.msra.mxu0 %v65
    %134 = vmatprep.subr.mxu0 0.0
    %135 = vmatpush2.msra.mxu0 %v64
    %136 = vmatprep.subr.mxu0 0.0
    %137 = vmatpush2.msra.mxu0 %v63
    %138 = vmatprep.subr.mxu0 0.0
    %139 = vmatpush2.msra.mxu0 %v62
    %140 = vmatprep.subr.mxu0 0.0
    %141 = vmatpush2.msra.mxu0 %v61
    %142 = vmatprep.subr.mxu0 0.0
    %143 = vmatpush2.msra.mxu0 %v60
    %144 = vmatprep.subr.mxu0 0.0
    %145 = vmatpush2.msra.mxu0 %v59
    %146 = vmatprep.mubr.f32.mxu0 %v42
    %147 = vmatmul.mubr.f32.gmra.mxu0 %v41
    %v148 = vpop.f32.mrf.mxu0
    %v149 = vadd.f32 %v80, %v148
    %v150 = vpop.f32.mrf.mxu0
    %151 = vdwg.mxu0
    %152 = vst [vmem:[#allocation7] sm:$0xff] %v149
    // Predicated region
    $region22: #{tpu_custom_call.1} parent=1 // pred_check
      _
    $region23: #{tpu_custom_call.1} parent=1 // pred_check_branch
      %154 = sbr.rel (0) target = $region25
    $region24: #{tpu_custom_call.1} parent=1 // pred_region
      %s156 = ssub.s32 128, 128
      %157 = vsyncadd [#allocation4], %s156
      %s159 = sshll.u32 [#allocation7], 4
      %s160 = int_to_ptr.vmem [resolvable:$true] %s159
      %162 = dma.vmem_to_hbm [thread:$0]  %s160, 128, %s3, [#allocation4]
    $region25: #{tpu_custom_call.1} parent=1 // pred_fallthru
      _
    // Predicated region
    $region26: #{tpu_custom_call.1} parent=1 // pred_check
      _
    $region27: #{tpu_custom_call.1} parent=1 // pred_check_branch
      %164 = sbr.rel (0) target = $region29
    $region28: #{tpu_custom_call.1} parent=1 // pred_region
      %165 = dma.done [#allocation4], 128
    $region29: #{tpu_custom_call.1} parent=1 // pred_fallthru
      _
    %166 = vsyncpa [#allocation3], 1
    %167 = vsyncpa [#allocation6], 1
    %168 = vsyncpa [#allocation4], 1

</llo_original>
